<compile_context>
chip_gen: v5e
topology: v5e:2x2
jax: 0.10.0
libtpu: 0.0.40
codegen_flags: <defaults>
</compile_context>

<pallas_src>
import jax
import jax.numpy as jnp
from jax import lax
from jax.experimental import pallas as pl
from jax.experimental.pallas import tpu as pltpu

LANES = 128
MAX_TILE_ROWS = 2048      # per-block DMA tile: 2048x128 f32 = 1 MiB per input
CHUNK_ROWS = 128          # in-kernel compute chunk: 16 vregs per f32 value
NUM_CORES = 2             # leading grid axis (v7x megacore); gated by work


def _make_kernel(tile_rows, chunk_rows, steps_per_core, num_blocks,
                 last_block_valid):
    """Builds the kernel with trace-time constants baked in.

    last_block_valid: number of valid elements in the last global block, or
    None if every block is completely full (no masking needed anywhere).
    """
    n_full_chunks = tile_rows // chunk_rows
    tail_rows = tile_rows - n_full_chunks * chunk_rows   # multiple of 8

    def chunk_body(x_ref, t_ref, acc_ref, start_row, rows, mask_valid):
        # `rows` and `mask_valid` are Python constants; `start_row` may be a
        # traced loop index (always a multiple of 8).
        x = x_ref[pl.ds(start_row, rows), :].astype(jnp.float32)
        t = t_ref[pl.ds(start_row, rows), :].astype(jnp.float32)

        # e = exp(-|x|); one_plus_e reused for both the BCE log-term and the
        # sigmoid denominator (saves a full-chunk VALU add + an intermediate).
        e = jnp.exp(-jnp.abs(x))
        one_plus_e = 1.0 + e
        bce = jnp.maximum(x, 0.0) - x * t + jnp.log(one_plus_e)
        r = pl.reciprocal(one_plus_e, approx=True)       # EUP, ~1e-4 rel err
        p = jnp.where(x >= 0.0, r, e * r)                # sigmoid(x)

        terms = (bce, p * t, p + t)
        if mask_valid is not None:
            rid = lax.broadcasted_iota(jnp.int32, (rows, LANES), 0)
            lid = lax.broadcasted_iota(jnp.int32, (rows, LANES), 1)
            valid = rid * LANES + lid < mask_valid
            terms = tuple(jnp.where(valid, v, 0.0) for v in terms)

        # Pure-VPU partial reduction onto the (8, 128) per-lane accumulators.
        for q, v in enumerate(terms):
            acc_ref[0, q] += jnp.sum(v.reshape(rows // 8, 8, LANES), axis=0)

    def full_block(x_ref, t_ref, acc_ref):
        if n_full_chunks == 1:
            chunk_body(x_ref, t_ref, acc_ref, 0, chunk_rows, None)
        elif n_full_chunks > 1:
            # Real loop (scf.for) so chunk intermediates don't stay live
            # across the whole tile (avoids vreg spills at large tiles).
            @pl.loop(0, n_full_chunks)
            def _(ci):
                start = pl.multiple_of(ci * chunk_rows, chunk_rows)
                chunk_body(x_ref, t_ref, acc_ref, start, chunk_rows, None)
        if tail_rows > 0:
            chunk_body(x_ref, t_ref, acc_ref, n_full_chunks * chunk_rows,
                       tail_rows, None)

    def masked_last_block(x_ref, t_ref, acc_ref, valid_count):
        # Static chunk schedule (valid_count is a trace-time constant):
        # unmasked full chunks, one masked boundary chunk, skip the rest.
        start = 0
        while start < tile_rows:
            rows = min(chunk_rows, tile_rows - start)
            lo = start * LANES
            hi = (start + rows) * LANES
            if lo >= valid_count:
                break
            mask = None if hi <= valid_count else valid_count - lo
            chunk_body(x_ref, t_ref, acc_ref, start, rows, mask)
            start += rows

    def kernel(x_ref, t_ref, acc_ref):
        c = pl.program_id(0)              # core (parallel) axis
        i = pl.program_id(1)              # reduction (arbitrary) axis
        b = c * steps_per_core + i        # global block index

        @pl.when(i == 0)
        def _():
            acc_ref[...] = jnp.zeros_like(acc_ref)

        if last_block_valid is None:
            @pl.when(b < num_blocks)
            def _():
                full_block(x_ref, t_ref, acc_ref)
        else:
            @pl.when(b < num_blocks - 1)
            def _():
                full_block(x_ref, t_ref, acc_ref)

            @pl.when(b == num_blocks - 1)
            def _():
                masked_last_block(x_ref, t_ref, acc_ref, last_block_valid)

    return kernel


def combined_loss(predictions, targets, smooth=1.0):
    assert predictions.shape == targets.shape
    n = predictions.size

    x = predictions.reshape(-1)
    t = targets.reshape(-1)

    # Minimal alignment to a multiple of 8*128 only when needed (typical NCHW
    # image shapes, including the test shape, are already aligned).  Any pad
    # elements are excluded in-kernel by the last-block mask.
    align = 8 * LANES
    n_aligned = ((n + align - 1) // align) * align
    if n_aligned != n:
        x = jnp.pad(x, (0, n_aligned - n))
        t = jnp.pad(t, (0, n_aligned - n))

    rows = n_aligned // LANES            # multiple of 8
    x2 = x.reshape(rows, LANES)
    t2 = t.reshape(rows, LANES)

    tile_rows = min(MAX_TILE_ROWS, rows)
    chunk_rows = min(CHUNK_ROWS, tile_rows)
    num_blocks = int(pl.cdiv(rows, tile_rows))

    # Gate the core axis by available work: small inputs (num_blocks == 1)
    # never pay a dead grid step or duplicate DMA.
    num_cores = min(NUM_CORES, num_blocks)
    steps_per_core = int(pl.cdiv(num_blocks, num_cores))

    block_elems = tile_rows * LANES
    last_valid = n - (num_blocks - 1) * block_elems
    last_block_valid = None if last_valid == block_elems else last_valid

    kernel = _make_kernel(tile_rows, chunk_rows, steps_per_core, num_blocks,
                          last_block_valid)

    def in_map(c, i):
        b = c * steps_per_core + i
        # Dead steps (only possible on the final core with an odd block
        # count) clamp to that core's previously-fetched block index, so the
        # pipeline keeps the resident buffer instead of issuing a new DMA;
        # compute for those steps is skipped via pl.when.
        return (jnp.minimum(b, num_blocks - 1), 0)

    in_spec = pl.BlockSpec((tile_rows, LANES), in_map)
    out_spec = pl.BlockSpec((1, 3, 8, LANES), lambda c, i: (c, 0, 0, 0))
    # TODO(synk): sweep pipeline_mode=pl.Buffered(3) on in_spec for v7x.

    def run(core_sem):
        return pl.pallas_call(
            kernel,
            out_shape=jax.ShapeDtypeStruct((num_cores, 3, 8, LANES),
                                           jnp.float32),
            grid_spec=pltpu.PrefetchScalarGridSpec(
                num_scalar_prefetch=0,
                grid=(num_cores, steps_per_core),
                in_specs=[in_spec, in_spec],
                out_specs=out_spec,
            ),
            compiler_params=pltpu.CompilerParams(
                dimension_semantics=(core_sem, pltpu.ARBITRARY),
                vmem_limit_bytes=32 * 1024 * 1024,
            ),
        )(x2, t2)

    if num_cores > 1:
        # CORE_PARALLEL makes the 2-TensorCore split real on v7x; fall back to
        # plain PARALLEL on backends that reject that semantics.
        try:
            partials = run(pltpu.CORE_PARALLEL)
        except Exception:
            partials = run(pltpu.PARALLEL)
    else:
        partials = run(pltpu.ARBITRARY)

    # Final cross-lane / cross-core reduction (tiny: num_cores*3*8*128 elems).
    sums = jnp.sum(partials, axis=(0, 2, 3))          # (3,)
    bce_sum, intersection, p_plus_t_sum = sums[0], sums[1], sums[2]

    bce_loss = bce_sum / n                             # reduction='mean'
    dice_loss = 1.0 - (2.0 * intersection + smooth) / (p_plus_t_sum + smooth)
    return 0.5 * bce_loss + 0.5 * dice_loss


def _reference_loss(predictions, targets, smooth=1.0):
    x = predictions.astype(jnp.float32)
    t = targets.astype(jnp.float32)
    bce = jnp.mean(jnp.maximum(x, 0.0) - x * t + jnp.log1p(jnp.exp(-jnp.abs(x))))
    p = jax.nn.sigmoid(x).reshape(-1)
    tf = t.reshape(-1)
    inter = jnp.sum(p * tf)
    dice = 1.0 - (2.0 * inter + smooth) / (jnp.sum(p) + jnp.sum(tf) + smooth)
    return 0.5 * bce + 0.5 * dice


if __name__ == "__main__":
    key = jax.random.PRNGKey(0)
    k1, k2 = jax.random.split(key)

    # predictions: logits, targets: binary labels (same shape, NCHW).
    predictions = jax.random.normal(k1, (2, 4, 16, 16), dtype=jnp.float32)
    targets = jax.random.bernoulli(k2, 0.5, (2, 4, 16, 16)).astype(jnp.float32)

    loss = combined_loss(predictions, targets, smooth=1.0)
    loss = jax.block_until_ready(loss)

    ref = _reference_loss(predictions, targets, smooth=1.0)
    # Tolerance reflects the EUP approx-reciprocal used for the sigmoid
    # (per-element rel. error ~1e-4; BCE path is exact).
    assert jnp.allclose(loss, ref, atol=1e-3, rtol=1e-3), (loss, ref)

    print("KERNEL_OK")
</pallas_src>

<mosaic_0001>
module attributes {stable_mosaic.version = 11 : i64} {
  func.func @kernel(%arg0: i32, %arg1: i32, %arg2: memref<16x128xf32, #tpu.memory_space<vmem>>, %arg3: memref<16x128xf32, #tpu.memory_space<vmem>>, %arg4: memref<1x3x8x128xf32, #tpu.memory_space<vmem>>) attributes {dimension_semantics = [#tpu.dimension_semantics<arbitrary>, #tpu.dimension_semantics<arbitrary>], iteration_bounds = array<i64: 1, 1>, scalar_prefetch = 0 : i64, scratch_operands = 0 : i64, tpu.core_type = #tpu.core_type<tc>, window_params = [{transform_indices = @transform_0, window_bounds = array<i64: 16, 128>}, {transform_indices = @transform_1, window_bounds = array<i64: 16, 128>}, {transform_indices = @transform_2, window_bounds = array<i64: 1, 3, 8, 128>}]} {
    %c1_i32 = arith.constant 1 : i32
    %0 = arith.muli %arg0, %c1_i32 : i32
    %1 = arith.addi %0, %arg1 : i32
    %c0_i32 = arith.constant 0 : i32
    %2 = arith.cmpi eq, %arg1, %c0_i32 : i32
    %3 = arith.extui %2 : i1 to i32
    %c0_i32_0 = arith.constant 0 : i32
    %4 = arith.cmpi ne, %3, %c0_i32_0 : i32
    scf.if %4 {
      %cst = arith.constant 0.000000e+00 : f32
      %8 = vector.broadcast %cst : f32 to vector<1x3x8x128xf32>
      %c0 = arith.constant 0 : index
      %c0_3 = arith.constant 0 : index
      %c0_4 = arith.constant 0 : index
      %c0_5 = arith.constant 0 : index
      %9 = vector.load %arg4[%c0, %c0_3, %c0_4, %c0_5] : memref<1x3x8x128xf32, #tpu.memory_space<vmem>>, vector<1x3x8x128xf32>
      tpu.vector_store %arg4[%c0, %c0_3, %c0_4, %c0_5], %8 {strides = array<i32>} : memref<1x3x8x128xf32, #tpu.memory_space<vmem>>, vector<1x3x8x128xf32>,
    } else {
    }
    %c1_i32_1 = arith.constant 1 : i32
    %5 = arith.cmpi slt, %1, %c1_i32_1 : i32
    %6 = arith.extui %5 : i1 to i32
    %c0_i32_2 = arith.constant 0 : i32
    %7 = arith.cmpi ne, %6, %c0_i32_2 : i32
    scf.if %7 {
      %c0 = arith.constant 0 : index
      %c0_3 = arith.constant 0 : index
      %8 = vector.load %arg2[%c0, %c0_3] : memref<16x128xf32, #tpu.memory_space<vmem>>, vector<16x128xf32>
      %c0_4 = arith.constant 0 : index
      %c0_5 = arith.constant 0 : index
      %9 = vector.load %arg3[%c0_4, %c0_5] : memref<16x128xf32, #tpu.memory_space<vmem>>, vector<16x128xf32>
      %10 = math.absf %8 : vector<16x128xf32>
      %cst = arith.constant 0.000000e+00 : f32
      %11 = vector.broadcast %cst : f32 to vector<16x128xf32>
      %12 = arith.subf %11, %10 : vector<16x128xf32>
      %13 = math.exp %12 : vector<16x128xf32>
      %cst_6 = arith.constant 1.000000e+00 : f32
      %14 = vector.broadcast %cst_6 : f32 to vector<16x128xf32>
      %15 = arith.addf %14, %13 : vector<16x128xf32>
      %cst_7 = arith.constant 0.000000e+00 : f32
      %16 = vector.broadcast %cst_7 : f32 to vector<16x128xf32>
      %17 = arith.maximumf %8, %16 : vector<16x128xf32>
      %18 = arith.mulf %8, %9 : vector<16x128xf32>
      %19 = arith.subf %17, %18 : vector<16x128xf32>
      %20 = math.log %15 : vector<16x128xf32>
      %21 = arith.addf %19, %20 : vector<16x128xf32>
      %22 = tpu.reciprocal %15 {approx = true} : vector<16x128xf32> -> vector<16x128xf32>
      %cst_8 = arith.constant 0.000000e+00 : f32
      %23 = vector.broadcast %cst_8 : f32 to vector<16x128xf32>
      %24 = arith.cmpf oge, %8, %23 : vector<16x128xf32>
      %25 = arith.mulf %13, %22 : vector<16x128xf32>
      %26 = arith.select %24, %22, %25 : vector<16x128xi1>, vector<16x128xf32>
      %27 = arith.mulf %26, %9 : vector<16x128xf32>
      %28 = arith.addf %26, %9 : vector<16x128xf32>
      %c0_9 = arith.constant 0 : index
      %c0_10 = arith.constant 0 : index
      %c0_11 = arith.constant 0 : index
      %c0_12 = arith.constant 0 : index
      %29 = vector.load %arg4[%c0_9, %c0_10, %c0_11, %c0_12] : memref<1x3x8x128xf32, #tpu.memory_space<vmem>>, vector<1x1x8x128xf32>
      %30 = vector.shape_cast %29 : vector<1x1x8x128xf32> to vector<8x128xf32>
      %31 = vector.shape_cast %21 : vector<16x128xf32> to vector<2x8x128xf32>
      %cst_13 = arith.constant dense<0.000000e+00> : vector<8x128xf32>
      %32 = vector.multi_reduction <add>, %31, %cst_13 [0] : vector<2x8x128xf32> to vector<8x128xf32>
      %33 = arith.addf %30, %32 : vector<8x128xf32>
      %c0_14 = arith.constant 0 : index
      %c0_15 = arith.constant 0 : index
      %c0_16 = arith.constant 0 : index
      %c0_17 = arith.constant 0 : index
      %34 = vector.load %arg4[%c0_14, %c0_15, %c0_16, %c0_17] : memref<1x3x8x128xf32, #tpu.memory_space<vmem>>, vector<1x1x8x128xf32>
      %35 = vector.shape_cast %34 : vector<1x1x8x128xf32> to vector<8x128xf32>
      %36 = vector.shape_cast %33 : vector<8x128xf32> to vector<1x1x8x128xf32>
      tpu.vector_store %arg4[%c0_14, %c0_15, %c0_16, %c0_17], %36 {strides = array<i32>} : memref<1x3x8x128xf32, #tpu.memory_space<vmem>>, vector<1x1x8x128xf32>,
      %c0_18 = arith.constant 0 : index
      %c1 = arith.constant 1 : index
      %c0_19 = arith.constant 0 : index
      %c0_20 = arith.constant 0 : index
      %37 = vector.load %arg4[%c0_18, %c1, %c0_19, %c0_20] : memref<1x3x8x128xf32, #tpu.memory_space<vmem>>, vector<1x1x8x128xf32>
      %38 = vector.shape_cast %37 : vector<1x1x8x128xf32> to vector<8x128xf32>
      %39 = vector.shape_cast %27 : vector<16x128xf32> to vector<2x8x128xf32>
      %cst_21 = arith.constant dense<0.000000e+00> : vector<8x128xf32>
      %40 = vector.multi_reduction <add>, %39, %cst_21 [0] : vector<2x8x128xf32> to vector<8x128xf32>
      %41 = arith.addf %38, %40 : vector<8x128xf32>
      %c0_22 = arith.constant 0 : index
      %c1_23 = arith.constant 1 : index
      %c0_24 = arith.constant 0 : index
      %c0_25 = arith.constant 0 : index
      %42 = vector.load %arg4[%c0_22, %c1_23, %c0_24, %c0_25] : memref<1x3x8x128xf32, #tpu.memory_space<vmem>>, vector<1x1x8x128xf32>
      %43 = vector.shape_cast %42 : vector<1x1x8x128xf32> to vector<8x128xf32>
      %44 = vector.shape_cast %41 : vector<8x128xf32> to vector<1x1x8x128xf32>
      tpu.vector_store %arg4[%c0_22, %c1_23, %c0_24, %c0_25], %44 {strides = array<i32>} : memref<1x3x8x128xf32, #tpu.memory_space<vmem>>, vector<1x1x8x128xf32>,
      %c0_26 = arith.constant 0 : index
      %c2 = arith.constant 2 : index
      %c0_27 = arith.constant 0 : index
      %c0_28 = arith.constant 0 : index
      %45 = vector.load %arg4[%c0_26, %c2, %c0_27, %c0_28] : memref<1x3x8x128xf32, #tpu.memory_space<vmem>>, vector<1x1x8x128xf32>
      %46 = vector.shape_cast %45 : vector<1x1x8x128xf32> to vector<8x128xf32>
      %47 = vector.shape_cast %28 : vector<16x128xf32> to vector<2x8x128xf32>
      %cst_29 = arith.constant dense<0.000000e+00> : vector<8x128xf32>
      %48 = vector.multi_reduction <add>, %47, %cst_29 [0] : vector<2x8x128xf32> to vector<8x128xf32>
      %49 = arith.addf %46, %48 : vector<8x128xf32>
      %c0_30 = arith.constant 0 : index
      %c2_31 = arith.constant 2 : index
      %c0_32 = arith.constant 0 : index
      %c0_33 = arith.constant 0 : index
      %50 = vector.load %arg4[%c0_30, %c2_31, %c0_32, %c0_33] : memref<1x3x8x128xf32, #tpu.memory_space<vmem>>, vector<1x1x8x128xf32>
      %51 = vector.shape_cast %50 : vector<1x1x8x128xf32> to vector<8x128xf32>
      %52 = vector.shape_cast %49 : vector<8x128xf32> to vector<1x1x8x128xf32>
      tpu.vector_store %arg4[%c0_30, %c2_31, %c0_32, %c0_33], %52 {strides = array<i32>} : memref<1x3x8x128xf32, #tpu.memory_space<vmem>>, vector<1x1x8x128xf32>,
    } else {
    }
    return
  }
  func.func @transform_0(%arg0: i32, %arg1: i32) -> (i32, i32) {
    %c1_i32 = arith.constant 1 : i32
    %0 = arith.muli %arg0, %c1_i32 : i32
    %1 = arith.addi %0, %arg1 : i32
    %c0_i32 = arith.constant 0 : i32
    %2 = arith.minsi %1, %c0_i32 : i32
    %c0_i32_0 = arith.constant 0 : i32
    %c0_i32_1 = arith.constant 0 : i32
    return %2, %c0_i32_0 : i32, i32
  }
  func.func @transform_1(%arg0: i32, %arg1: i32) -> (i32, i32) {
    %c1_i32 = arith.constant 1 : i32
    %0 = arith.muli %arg0, %c1_i32 : i32
    %1 = arith.addi %0, %arg1 : i32
    %c0_i32 = arith.constant 0 : i32
    %2 = arith.minsi %1, %c0_i32 : i32
    %c0_i32_0 = arith.constant 0 : i32
    %c0_i32_1 = arith.constant 0 : i32
    return %2, %c0_i32_0 : i32, i32
  }
  func.func @transform_2(%arg0: i32, %arg1: i32) -> (i32, i32, i32, i32) {
    %c0_i32 = arith.constant 0 : i32
    %c0_i32_0 = arith.constant 0 : i32
    %c0_i32_1 = arith.constant 0 : i32
    %c0_i32_2 = arith.constant 0 : i32
    return %arg0, %c0_i32, %c0_i32_0, %c0_i32_1 : i32, i32, i32, i32
  }
}

</mosaic_0001>

<llo_original>
// kernel: tpu_custom_call.1
$region0: #{tpu_custom_call.1}
  #allocation0 [shape = 'u32[]', space=smem, size = 0x4, offset = 0x4, fixed_abs, tag = 'smem constant byte address 0x4 - core index']
  #allocation1 [shape = 'u32[72,128]{1,0:T(1,128)}', space=vmem, size = 0x9000, scoped, tag = 'internal scratch']
  %s0 = inlined_call_operand.hbm [shape: f32[16,128], index: 0, kind: input, shape index: {}]
  %s1 = inlined_call_operand.hbm [shape: f32[16,128], index: 1, kind: input, shape index: {}]
  %s2 = inlined_call_operand.hbm [shape: f32[1,3,8,128], index: 2, kind: output, shape index: {}]
  %s3 = sld [smem:[#allocation0]]
  $region34: #{tpu_custom_call.1} parent=0
    _
  %s5 = ssub.s32 1, %s3
  %s6 = scalar_select 0, %s5, %s3
  $region1: #{tpu_custom_call.1} parent=0
    #allocation2 [shape = 'u8[8192]{0}', space=vmem, size = 0x2000, scoped, tag = 'input window, operand 0, single buffered']
    #allocation3 [shape = 's32[1]{0}', space=sflag, size = 0x4, scoped, tag = 'scoped memory for tpu_custom_call.1']
    #allocation4 [shape = 's32[1]{0}', space=sflag, size = 0x4, scoped, tag = 'scoped memory for tpu_custom_call.1']
    #allocation5 [shape = 'u8[8192]{0}', space=vmem, size = 0x2000, scoped, tag = 'input window, operand 1, single buffered']
    #allocation6 [shape = 's32[1]{0}', space=sflag, size = 0x4, scoped, tag = 'scoped memory for tpu_custom_call.1']
    #allocation7 [shape = 'u8[12288]{0}', space=vmem, size = 0x3000, scoped, tag = 'output window, operand 0, single buffered']
    %7 = vsyncpa [#allocation3], 0
    %8 = vsyncpa [#allocation6], 0
    %9 = vsyncpa [#allocation4], 0
    // Predicated region
    $region2: #{tpu_custom_call.1} parent=1 // pred_check
      _
    $region3: #{tpu_custom_call.1} parent=1 // pred_check_branch
      %11 = sbr.rel (0) target = $region5
    $region4: #{tpu_custom_call.1} parent=1 // pred_region
      %s12 = sadd.s32 0, 0
      %p13 = scmp.lt.s32.totalorder %s12, 0
      %s14 = scalar_select %p13, %s12, 0
      %s15 = smul.u32 2, %s14
      %17 = vsyncadd [#allocation3], 0
      %s18 = smul.addr %s15, 8
      %s19 = scalar_lea.hbm %s0, %s18
      %s20 = sshll.u32 %s19, 4
      %s21 = int_to_ptr.hbm [resolvable:$true] %s20
      %s22 = sshll.u32 [#allocation2], 4
      %s23 = int_to_ptr.vmem [resolvable:$true] %s22
      %28 = dma.hbm_to_vmem [thread:$0]  %s21, 256, %s23, [#allocation3], 128, 128, 8
    $region5: #{tpu_custom_call.1} parent=1 // pred_fallthru
      _
    // Predicated region
    $region6: #{tpu_custom_call.1} parent=1 // pred_check
      _
    $region7: #{tpu_custom_call.1} parent=1 // pred_check_branch
      %30 = sbr.rel (0) target = $region9
    $region8: #{tpu_custom_call.1} parent=1 // pred_region
      %s31 = sadd.s32 0, 0
      %p32 = scmp.lt.s32.totalorder %s31, 0
      %s33 = scalar_select %p32, %s31, 0
      %s34 = smul.u32 2, %s33
      %36 = vsyncadd [#allocation6], 0
      %s37 = smul.addr %s34, 8
      %s38 = scalar_lea.hbm %s1, %s37
      %s39 = sshll.u32 %s38, 4
      %s40 = int_to_ptr.hbm [resolvable:$true] %s39
      %s41 = sshll.u32 [#allocation5], 4
      %s42 = int_to_ptr.vmem [resolvable:$true] %s41
      %47 = dma.hbm_to_vmem [thread:$0]  %s40, 256, %s42, [#allocation6], 128, 128, 8
    $region9: #{tpu_custom_call.1} parent=1 // pred_fallthru
      _
    // Predicated region
    $region10: #{tpu_custom_call.1} parent=1 // pred_check
      _
    $region11: #{tpu_custom_call.1} parent=1 // pred_check_branch
      %49 = sbr.rel (0) target = $region13
    $region12: #{tpu_custom_call.1} parent=1 // pred_region
      %51 = dma.done [#allocation3], 256
    $region13: #{tpu_custom_call.1} parent=1 // pred_fallthru
      _
    // Predicated region
    $region14: #{tpu_custom_call.1} parent=1 // pred_check
      _
    $region15: #{tpu_custom_call.1} parent=1 // pred_check_branch
      %53 = sbr.rel (0) target = $region17
    $region16: #{tpu_custom_call.1} parent=1 // pred_region
      %55 = dma.done [#allocation6], 256
    $region17: #{tpu_custom_call.1} parent=1 // pred_fallthru
      _
    %s56 = sadd.s32 0, 0
    %p57 = scmp.lt.s32.totalorder %s56, 0
    %s58 = scalar_select %p57, %s56, 0
    %s59 = smul.u32 2, %s58
    %s60 = sadd.s32 0, 0
    %p61 = scmp.lt.s32.totalorder %s60, 0
    %s62 = scalar_select %p61, %s60, 0
    %s63 = smul.u32 2, %s62
    %s64 = sadd.s32 0, 0
    %p65 = scmp.eq.s32.totalorder 0, 0
    // Predicated region
    $region18: #{tpu_custom_call.1} parent=1 // pred_check
      %p66 = pneg %p65
    $region19: #{tpu_custom_call.1} parent=1 // pred_check_branch
      %68 = sbr.rel (%p66) target = $region21
    $region20: #{tpu_custom_call.1} parent=1 // pred_region
      %69 = vst [vmem:[#allocation7] sm:$0xff] 0.0
      %70 = vst [vmem:[#allocation7 + $0x8] sm:$0xff] 0.0
      %71 = vst [vmem:[#allocation7 + $0x10] sm:$0xff] 0.0
    $region21: #{tpu_custom_call.1} parent=1 // pred_fallthru
      _
    %p72 = scmp.lt.s32.totalorder %s64, 1
    // Predicated region
    $region22: #{tpu_custom_call.1} parent=1 // pred_check
      %p73 = pneg %p72
    $region23: #{tpu_custom_call.1} parent=1 // pred_check_branch
      %75 = sbr.rel (%p73) target = $region25
    $region24: #{tpu_custom_call.1} parent=1 // pred_region
      %v76 = vld [vmem:[#allocation2] sm:$0xff]
      %v77 = vld [vmem:[#allocation2 + $0x8] sm:$0xff]
      %v78 = vld [vmem:[#allocation5] sm:$0xff]
      %v79 = vld [vmem:[#allocation5 + $0x8] sm:$0xff]
      %v80 = vand.u32 2147483647, %v76
      %v81 = vand.u32 2147483647, %v77
      %v82 = vsub.f32 0.0, %v80
      %v83 = vsub.f32 0.0, %v81
      %v84 = vmul.f32 %v82, 1.442695
      %v85 = vpow.pop %v84
      %v86 = vmul.f32 %v83, 1.442695
      %v87 = vpow.pop %v86
      %v88 = vadd.f32 %v85, 1.0
      %v89 = vadd.f32 %v87, 1.0
      %v90 = vmax.f32 %v76, 0.0
      %v91 = vmax.f32 %v77, 0.0
      %v92 = vmul.f32 %v76, %v78
      %v93 = vmul.f32 %v77, %v79
      %v94 = vsub.f32 %v90, %v92
      %v95 = vsub.f32 %v91, %v93
      %v96 = vlog2.pop %v88
      %v97 = vmul.f32 %v96, 0.6931472
      %v98 = vlog2.pop %v89
      %v99 = vmul.f32 %v98, 0.6931472
      %v100 = vadd.f32 %v94, %v97
      %v101 = vadd.f32 %v95, %v99
      %v102 = vrcp.pop %v88
      %v103 = vrcp.pop %v89
      %vm104 = vcmp.ge.f32.partialorder %v76, 0.0
      %vm105 = vcmp.ge.f32.partialorder %v77, 0.0
      %v106 = vmul.f32 %v85, %v102
      %v107 = vmul.f32 %v87, %v103
      %v108 = vsel %vm104, %v102, %v106
      %v109 = vsel %vm105, %v103, %v107
      %v110 = vmul.f32 %v108, %v78
      %v111 = vmul.f32 %v109, %v79
      %v112 = vadd.f32 %v108, %v78
      %v113 = vadd.f32 %v109, %v79
      %v114 = vld [vmem:[#allocation7] sm:$0xff]
      %v115 = vadd.f32 %v100, %v101
      %v116 = vadd.f32 %v114, %v115
      %117 = vst [vmem:[#allocation7] sm:$0xff] %v116
      %s118 = scalar_lea.vmem [#allocation7], 8
      %v119 = vld [vmem:[%s118] sm:$0xff]
      %v120 = vadd.f32 %v110, %v111
      %v121 = vadd.f32 %v119, %v120
      %122 = vst [vmem:[%s118] sm:$0xff] %v121
      %s123 = scalar_lea.vmem [#allocation7], 16
      %v124 = vld [vmem:[%s123] sm:$0xff]
      %v125 = vadd.f32 %v112, %v113
      %v126 = vadd.f32 %v124, %v125
      %127 = vst [vmem:[%s123] sm:$0xff] %v126
    $region25: #{tpu_custom_call.1} parent=1 // pred_fallthru
      _
    // Predicated region
    $region26: #{tpu_custom_call.1} parent=1 // pred_check
      _
    $region27: #{tpu_custom_call.1} parent=1 // pred_check_branch
      %129 = sbr.rel (0) target = $region29
    $region28: #{tpu_custom_call.1} parent=1 // pred_region
      %131 = vsyncadd [#allocation4], 0
      %s132 = sshll.u32 [#allocation7], 4
      %s133 = int_to_ptr.vmem [resolvable:$true] %s132
      %s134 = sshll.u32 %s2, 4
      %s135 = int_to_ptr.hbm [resolvable:$true] %s134
      %140 = dma.vmem_to_hbm [thread:$0]  %s133, 384, %s135, [#allocation4], 128, 128, 8
    $region29: #{tpu_custom_call.1} parent=1 // pred_fallthru
      _
    // Predicated region
    $region30: #{tpu_custom_call.1} parent=1 // pred_check
      _
    $region31: #{tpu_custom_call.1} parent=1 // pred_check_branch
      %142 = sbr.rel (0) target = $region33
    $region32: #{tpu_custom_call.1} parent=1 // pred_region
      %144 = dma.done [#allocation4], 384
    $region33: #{tpu_custom_call.1} parent=1 // pred_fallthru
      _
    %145 = vsyncpa [#allocation3], 1
    %146 = vsyncpa [#allocation6], 1
    %147 = vsyncpa [#allocation4], 1

</llo_original>
